<compile_context>
chip_gen: v5e
topology: v5e:2x2
jax: 0.10.0
libtpu: 0.0.40
codegen_flags: <defaults>
</compile_context>

<pallas_src>
import functools

import jax
import jax.numpy as jnp
from jax.experimental import pallas as pl
from jax.experimental.pallas import tpu as pltpu


_LANE = 128


def _round_up(x, m):
    return ((x + m - 1) // m) * m


def _vmem_capacity_bytes():
    """Physical per-core VMEM capacity, with a conservative fallback."""
    try:
        cap = int(pltpu.get_tpu_info().vmem_capacity_bytes)
        if cap > 0:
            return cap
    except Exception:
        pass
    return 64 * 1024 * 1024  # conservative: v7x per-TensorCore VMEM


# --------------------------------------------------------------------------
# Kernels
# --------------------------------------------------------------------------
def _fc1_bn_relu(x_ref, w1_ref, gamma_ref, beta_ref, *, eps, inv_n):
    """fc1 tile -> training-mode BatchNorm (exact per tile) -> ReLU, in f32."""
    # fc1 bias is dropped: BatchNorm's mean subtraction cancels it exactly.
    h = jnp.dot(x_ref[...], w1_ref[...], preferred_element_type=jnp.float32)
    # Centered two-pass variance (robust even if eps were made tiny).
    mean = jnp.sum(h, axis=0, keepdims=True) * inv_n                # [1, tH]
    centered = h - mean
    var = jnp.maximum(
        jnp.sum(centered * centered, axis=0, keepdims=True) * inv_n, 0.0)
    inv_std = jax.lax.rsqrt(var + eps)                              # EUP
    scale = gamma_ref[...].astype(jnp.float32) * inv_std            # [1, tH]
    shift = beta_ref[...].astype(jnp.float32)                       # [1, tH]
    return jnp.maximum(centered * scale + shift, 0.0)               # [N, tH]


def _mlp_kernel_f32out(x_ref, w1_ref, gamma_ref, beta_ref, w2_ref, b2_ref,
                       o_ref, *, eps, inv_n):
    """f32 output: accumulate directly into the resident output block."""
    j = pl.program_id(0)

    @pl.when(j == 0)
    def _():
        o_ref[...] = jnp.broadcast_to(
            b2_ref[...].astype(o_ref.dtype), o_ref.shape)

    h = _fc1_bn_relu(x_ref, w1_ref, gamma_ref, beta_ref, eps=eps, inv_n=inv_n)
    o_ref[...] += jnp.dot(h.astype(w2_ref.dtype), w2_ref[...],
                          preferred_element_type=jnp.float32)


def _mlp_kernel_acc(x_ref, w1_ref, gamma_ref, beta_ref, w2_ref, b2_ref,
                    o_ref, acc_ref, *, eps, inv_n):
    """Narrow output dtype: keep an f32 accumulator scratch, cast at the end."""
    j = pl.program_id(0)

    @pl.when(j == 0)
    def _():
        acc_ref[...] = jnp.zeros_like(acc_ref)

    h = _fc1_bn_relu(x_ref, w1_ref, gamma_ref, beta_ref, eps=eps, inv_n=inv_n)
    acc_ref[...] += jnp.dot(h.astype(w2_ref.dtype), w2_ref[...],
                            preferred_element_type=jnp.float32)

    @pl.when(j == pl.num_programs(0) - 1)
    def _():
        o_ref[...] = (acc_ref[...]
                      + b2_ref[...].astype(jnp.float32)).astype(o_ref.dtype)


# --------------------------------------------------------------------------
# Parameter preparation (one-time, hoisted out of the per-call path)
# --------------------------------------------------------------------------
def prepare_params(params, *, weight_dtype=None):
    """Pad feature axes to lane (128) multiples and optionally cast weights.

    Done once so the forward pass never re-pads/re-casts the weight matrices
    (they are streamed from HBM exactly once per call; per-call copies would
    roughly double HBM traffic in the mem-bound regime).
    """
    w1, gamma, beta, w2, b2 = (params["w1"], params["gamma"], params["beta"],
                               params["w2"], params["b2"])
    d, h = w1.shape
    o = w2.shape[1]
    d_p, h_p, o_p = (_round_up(d, _LANE), _round_up(h, _LANE),
                     _round_up(o, _LANE))
    wd = jnp.dtype(weight_dtype) if weight_dtype is not None else w1.dtype

    def pad2(a, r, c):
        if a.shape == (r, c):
            return a
        return jnp.pad(a, ((0, r - a.shape[0]), (0, c - a.shape[1])))

    return {
        "w1": pad2(w1.astype(wd), d_p, h_p),
        "w2": pad2(w2.astype(wd), h_p, o_p),
        "gamma": pad2(gamma, 1, h_p),
        "beta": pad2(beta, 1, h_p),
        "b2": pad2(b2, 1, o_p),
        "eps": float(params["eps"]),
        "dims": (d, h, o),
        "padded_dims": (d_p, h_p, o_p),
        "weight_dtype": wd,
    }


# --------------------------------------------------------------------------
# Forward wrapper
# --------------------------------------------------------------------------
def mlp_forward(x, prepared, *, max_tile_h=None):
    """x: [N, input_dim]; prepared: output of prepare_params. -> [N, out_dim]."""
    d, _, o_dim = prepared["dims"]
    d_p, h_p, o_p = prepared["padded_dims"]
    w1_p, gamma_p, beta_p = prepared["w1"], prepared["gamma"], prepared["beta"]
    w2_p, b2_p = prepared["w2"], prepared["b2"]
    eps = prepared["eps"]
    w_dtype = prepared["weight_dtype"]

    n = x.shape[0]
    assert x.shape[1] == d, (x.shape, d)
    out_dtype = x.dtype

    # Only the activations are touched per call.  Batch axis is never padded
    # (it would change the BatchNorm statistics).
    x_p = x.astype(w_dtype)
    if d_p != d:
        x_p = jnp.pad(x_p, ((0, 0), (0, d_p - d)))

    use_scratch = jnp.dtype(out_dtype) != jnp.float32

    # ---- Generation-aware VMEM budget (v7x: 64 MiB/TC, v5e/v6e: 128 MiB).
    vmem_cap = _vmem_capacity_bytes()
    budget = int(0.85 * vmem_cap)
    if max_tile_h is None:
        max_tile_h = 256 if vmem_cap <= 64 * 1024 * 1024 else 512
    max_tile_h = max((int(max_tile_h) // _LANE) * _LANE, _LANE)

    w_bytes = jnp.dtype(w_dtype).itemsize
    x_bytes = jnp.dtype(x_p.dtype).itemsize
    o_bytes = jnp.dtype(out_dtype).itemsize

    # Resident (t_h-independent) VMEM; conservatively assume 2 buffers even
    # though the constant-index blocks are requested single-buffered.
    fixed = 2 * (n * d_p * x_bytes + n * o_p * o_bytes + o_p * 4)
    if use_scratch:
        fixed += n * o_p * 4
    # Per unit of t_h: double-buffered w1/w2 tiles, gamma/beta, [N,tH] f32 temp.
    per_th = 2 * (d_p + o_p) * w_bytes + 2 * 2 * 4 + n * 4
    if fixed + per_th * _LANE > budget:
        # TODO(synk): batch-tiled two-phase BatchNorm for very large N (and
        # v7x megacore batch parallelism) not implemented.
        raise NotImplementedError(
            f"batch={n} does not fit the single-resident-batch MLP kernel in "
            f"{budget} bytes of VMEM on this TPU generation")

    # ---- Hidden-dim tile selection.
    t_h = min(max_tile_h, int((budget - fixed) // per_th), h_p)
    t_h = max((t_h // _LANE) * _LANE, _LANE)
    while h_p % t_h != 0:
        t_h -= _LANE
    # Prefer 256-wide tiles for the 256x256 MXUs when it still divides H.
    if t_h > 256 and t_h % 256 != 0 and h_p % ((t_h // 256) * 256) == 0:
        t_h = (t_h // 256) * 256
    # Guarantee >= 2 grid steps when possible so weight DMA overlaps compute.
    if h_p // t_h < 2 and h_p >= 2 * _LANE:
        t_h = max(((h_p // 2) // _LANE) * _LANE, _LANE)
        while h_p % t_h != 0:
            t_h -= _LANE
    n_tiles = h_p // t_h

    vmem_est = (fixed
                + 2 * (d_p + o_p) * t_h * w_bytes
                + 2 * 2 * t_h * 4
                + n * t_h * 4)
    vmem_limit = int(min(budget, max(2 * vmem_est, 8 * 1024 * 1024)))

    cost = pl.CostEstimate(
        flops=2 * n * d_p * h_p + 2 * n * h_p * o_p,
        transcendentals=h_p,
        bytes_accessed=int(x_p.size * x_bytes
                           + (w1_p.size + w2_p.size) * w_bytes
                           + (gamma_p.size + beta_p.size + b2_p.size) * 4
                           + n * o_p * o_bytes),
    )

    if use_scratch:
        kernel = functools.partial(_mlp_kernel_acc, eps=eps, inv_n=1.0 / n)
        scratch = [pltpu.VMEM((n, o_p), jnp.float32)]
    else:
        kernel = functools.partial(_mlp_kernel_f32out, eps=eps, inv_n=1.0 / n)
        scratch = []

    def run(single_buffer_constants):
        def spec(shape, index_map, constant):
            if constant and single_buffer_constants:
                # Constant-index blocks: double-buffering only doubles their
                # VMEM footprint, so request a single buffer.
                return pl.BlockSpec(shape, index_map,
                                    pipeline_mode=pl.Buffered(1))
            return pl.BlockSpec(shape, index_map)

        grid_spec = pltpu.PrefetchScalarGridSpec(
            num_scalar_prefetch=0,
            grid=(n_tiles,),
            in_specs=[
                spec((n, d_p), lambda j: (0, 0), True),      # x   (resident)
                spec((d_p, t_h), lambda j: (0, j), False),   # w1  tile
                spec((1, t_h), lambda j: (0, j), False),     # gamma tile
                spec((1, t_h), lambda j: (0, j), False),     # beta  tile
                spec((t_h, o_p), lambda j: (j, 0), False),   # w2  tile
                spec((1, o_p), lambda j: (0, 0), True),      # b2  (resident)
            ],
            out_specs=spec((n, o_p), lambda j: (0, 0), True),
            scratch_shapes=scratch,
        )
        return pl.pallas_call(
            kernel,
            out_shape=jax.ShapeDtypeStruct((n, o_p), out_dtype),
            grid_spec=grid_spec,
            compiler_params=pltpu.CompilerParams(
                dimension_semantics=("arbitrary",),   # reduction over H tiles
                vmem_limit_bytes=vmem_limit,
            ),
            cost_estimate=cost,
        )(x_p, w1_p, gamma_p, beta_p, w2_p, b2_p)

    try:
        out_p = run(True)
    except Exception:
        # Fallback if this Pallas build rejects single-buffered BlockSpecs.
        out_p = run(False)

    if o_p != o_dim:
        out_p = out_p[:, :o_dim]
    return out_p


# --------------------------------------------------------------------------
# Init + pure-JAX reference + checks
# --------------------------------------------------------------------------
def init_params(key, input_dim, hidden_dim, output_dim, dtype=jnp.float32):
    """Deterministic synthetic init (PyTorch-Linear-style uniform bounds)."""
    k1, k2, k3, k4, k5, k6 = jax.random.split(key, 6)
    bound1 = 1.0 / (input_dim ** 0.5)
    bound2 = 1.0 / (hidden_dim ** 0.5)
    return {
        # Linear weights stored transposed: [in_features, out_features].
        "w1": jax.random.uniform(k1, (input_dim, hidden_dim), dtype,
                                 minval=-bound1, maxval=bound1),
        # b1 is kept for the reference; the kernel drops it (BN cancels it).
        "b1": jax.random.uniform(k2, (1, hidden_dim), dtype,
                                 minval=-bound1, maxval=bound1),
        "gamma": 1.0 + 0.1 * jax.random.normal(k3, (1, hidden_dim), dtype),
        "beta": 0.1 * jax.random.normal(k4, (1, hidden_dim), dtype),
        "w2": jax.random.uniform(k5, (hidden_dim, output_dim), dtype,
                                 minval=-bound2, maxval=bound2),
        "b2": jax.random.uniform(k6, (1, output_dim), dtype,
                                 minval=-bound2, maxval=bound2),
        # nn.BatchNorm1d(hidden_dim, output_dim) binds output_dim to eps.
        "eps": float(output_dim),
    }


def mlp_reference(x, params):
    """Pure-JAX reference of the PyTorch forward (training-mode batch norm)."""
    h = x @ params["w1"] + params["b1"]
    mean = jnp.mean(h, axis=0, keepdims=True)
    var = jnp.mean((h - mean) ** 2, axis=0, keepdims=True)
    h = (h - mean) / jnp.sqrt(var + params["eps"])
    h = h * params["gamma"] + params["beta"]
    h = jnp.maximum(h, 0.0)
    return h @ params["w2"] + params["b2"]


def _check(batch, input_dim, hidden_dim, output_dim, *, weight_dtype=None,
           atol=2e-4, rtol=2e-4, max_tile_h=None):
    key = jax.random.PRNGKey(0)
    kx, kp = jax.random.split(key)
    x = jax.random.normal(kx, (batch, input_dim), jnp.float32)
    params = init_params(kp, input_dim, hidden_dim, output_dim)
    prepared = prepare_params(params, weight_dtype=weight_dtype)

    out = mlp_forward(x, prepared, max_tile_h=max_tile_h)
    out = jax.block_until_ready(out)
    ref = mlp_reference(x, params)

    assert out.shape == (batch, output_dim), out.shape
    err = float(jnp.max(jnp.abs(out - ref)))
    assert jnp.allclose(out, ref, atol=atol, rtol=rtol), err


if __name__ == "__main__":
    # Small primary shape (single hidden tile after padding to 128).
    _check(batch=8, input_dim=32, hidden_dim=64, output_dim=16)
    # Multi-tile hidden accumulation (grid=(2,)); also exercises the
    # max_tile_h rounding fix (200 -> 128).
    _check(batch=16, input_dim=48, hidden_dim=256, output_dim=24,
           max_tile_h=200)
    # bf16 weight streaming (cast once in prepare_params), f32 accumulation.
    _check(batch=16, input_dim=48, hidden_dim=256, output_dim=24,
           weight_dtype=jnp.bfloat16, atol=5e-2, rtol=5e-2)
    print("KERNEL_OK")
</pallas_src>

<mosaic_0001>
module attributes {stable_mosaic.version = 11 : i64} {
  func.func @_mlp_kernel_f32out(%arg0: i32, %arg1: memref<8x128xf32, #tpu.memory_space<vmem>>, %arg2: memref<128x128xf32, #tpu.memory_space<vmem>>, %arg3: memref<1x128xf32, #tpu.memory_space<vmem>>, %arg4: memref<1x128xf32, #tpu.memory_space<vmem>>, %arg5: memref<128x128xf32, #tpu.memory_space<vmem>>, %arg6: memref<1x128xf32, #tpu.memory_space<vmem>>, %arg7: memref<8x128xf32, #tpu.memory_space<vmem>>) attributes {dimension_semantics = [#tpu.dimension_semantics<arbitrary>], iteration_bounds = array<i64: 1>, scalar_prefetch = 0 : i64, scratch_operands = 0 : i64, tpu.core_type = #tpu.core_type<tc>, window_params = [{pipeline_mode = #tpu.pipeline_mode<synchronous>, transform_indices = @transform_0, window_bounds = array<i64: 8, 128>}, {transform_indices = @transform_1, window_bounds = array<i64: 128, 128>}, {transform_indices = @transform_2, window_bounds = array<i64: 1, 128>}, {transform_indices = @transform_3, window_bounds = array<i64: 1, 128>}, {transform_indices = @transform_4, window_bounds = array<i64: 128, 128>}, {pipeline_mode = #tpu.pipeline_mode<synchronous>, transform_indices = @transform_5, window_bounds = array<i64: 1, 128>}, {pipeline_mode = #tpu.pipeline_mode<synchronous>, transform_indices = @transform_6, window_bounds = array<i64: 8, 128>}]} {
    %c0_i32 = arith.constant 0 : i32
    %0 = arith.cmpi eq, %arg0, %c0_i32 : i32
    %1 = arith.extui %0 : i1 to i32
    %c0_i32_0 = arith.constant 0 : i32
    %2 = arith.cmpi ne, %1, %c0_i32_0 : i32
    scf.if %2 {
      %c0_22 = arith.constant 0 : index
      %c0_23 = arith.constant 0 : index
      %36 = vector.load %arg6[%c0_22, %c0_23] : memref<1x128xf32, #tpu.memory_space<vmem>>, vector<1x128xf32>
      %37 = vector.shape_cast %36 : vector<1x128xf32> to vector<1x128xf32>
      %38 = vector.broadcast %37 : vector<1x128xf32> to vector<8x128xf32>
      %c0_24 = arith.constant 0 : index
      %c0_25 = arith.constant 0 : index
      %39 = vector.load %arg7[%c0_24, %c0_25] : memref<8x128xf32, #tpu.memory_space<vmem>>, vector<8x128xf32>
      tpu.vector_store %arg7[%c0_24, %c0_25], %38 {strides = array<i32>} : memref<8x128xf32, #tpu.memory_space<vmem>>, vector<8x128xf32>,
    } else {
    }
    %c0 = arith.constant 0 : index
    %c0_1 = arith.constant 0 : index
    %3 = vector.load %arg1[%c0, %c0_1] : memref<8x128xf32, #tpu.memory_space<vmem>>, vector<8x128xf32>
    %c0_2 = arith.constant 0 : index
    %c0_3 = arith.constant 0 : index
    %4 = vector.load %arg2[%c0_2, %c0_3] : memref<128x128xf32, #tpu.memory_space<vmem>>, vector<128x128xf32>
    %cst = arith.constant dense<0.000000e+00> : vector<8x128xf32>
    %5 = tpu.matmul %3, %4, %cst {dimension_numbers = #tpu.dot_dimension_numbers<[1], [0], [0], [1], [0, 0, 1, 1], [], []>} : vector<8x128xf32>, vector<128x128xf32>, vector<8x128xf32> -> vector<8x128xf32>
    %cst_4 = arith.constant dense<0.000000e+00> : vector<128xf32>
    %6 = vector.multi_reduction <add>, %5, %cst_4 [0] : vector<8x128xf32> to vector<128xf32>
    %7 = vector.shape_cast %6 : vector<128xf32> to vector<1x128xf32>
    %cst_5 = arith.constant 1.250000e-01 : f32
    %8 = vector.broadcast %cst_5 : f32 to vector<1x128xf32>
    %9 = arith.mulf %7, %8 : vector<1x128xf32>
    %10 = vector.broadcast %9 : vector<1x128xf32> to vector<8x128xf32>
    %11 = arith.subf %5, %10 : vector<8x128xf32>
    %12 = arith.mulf %11, %11 : vector<8x128xf32>
    %cst_6 = arith.constant dense<0.000000e+00> : vector<128xf32>
    %13 = vector.multi_reduction <add>, %12, %cst_6 [0] : vector<8x128xf32> to vector<128xf32>
    %14 = vector.shape_cast %13 : vector<128xf32> to vector<1x128xf32>
    %cst_7 = arith.constant 1.250000e-01 : f32
    %15 = vector.broadcast %cst_7 : f32 to vector<1x128xf32>
    %16 = arith.mulf %14, %15 : vector<1x128xf32>
    %cst_8 = arith.constant 0.000000e+00 : f32
    %17 = vector.broadcast %cst_8 : f32 to vector<1x128xf32>
    %18 = arith.maximumf %16, %17 : vector<1x128xf32>
    %cst_9 = arith.constant 1.600000e+01 : f32
    %19 = vector.broadcast %cst_9 : f32 to vector<1x128xf32>
    %20 = arith.addf %18, %19 : vector<1x128xf32>
    %21 = math.rsqrt %20 : vector<1x128xf32>
    %c0_10 = arith.constant 0 : index
    %c0_11 = arith.constant 0 : index
    %22 = vector.load %arg3[%c0_10, %c0_11] : memref<1x128xf32, #tpu.memory_space<vmem>>, vector<1x128xf32>
    %23 = arith.mulf %22, %21 : vector<1x128xf32>
    %c0_12 = arith.constant 0 : index
    %c0_13 = arith.constant 0 : index
    %24 = vector.load %arg4[%c0_12, %c0_13] : memref<1x128xf32, #tpu.memory_space<vmem>>, vector<1x128xf32>
    %25 = vector.broadcast %23 : vector<1x128xf32> to vector<8x128xf32>
    %26 = arith.mulf %11, %25 : vector<8x128xf32>
    %27 = vector.broadcast %24 : vector<1x128xf32> to vector<8x128xf32>
    %28 = arith.addf %26, %27 : vector<8x128xf32>
    %cst_14 = arith.constant 0.000000e+00 : f32
    %29 = vector.broadcast %cst_14 : f32 to vector<8x128xf32>
    %30 = arith.maximumf %28, %29 : vector<8x128xf32>
    %c0_15 = arith.constant 0 : index
    %c0_16 = arith.constant 0 : index
    %31 = vector.load %arg7[%c0_15, %c0_16] : memref<8x128xf32, #tpu.memory_space<vmem>>, vector<8x128xf32>
    %c0_17 = arith.constant 0 : index
    %c0_18 = arith.constant 0 : index
    %32 = vector.load %arg5[%c0_17, %c0_18] : memref<128x128xf32, #tpu.memory_space<vmem>>, vector<128x128xf32>
    %cst_19 = arith.constant dense<0.000000e+00> : vector<8x128xf32>
    %33 = tpu.matmul %30, %32, %cst_19 {dimension_numbers = #tpu.dot_dimension_numbers<[1], [0], [0], [1], [0, 0, 1, 1], [], []>} : vector<8x128xf32>, vector<128x128xf32>, vector<8x128xf32> -> vector<8x128xf32>
    %34 = arith.addf %31, %33 : vector<8x128xf32>
    %c0_20 = arith.constant 0 : index
    %c0_21 = arith.constant 0 : index
    %35 = vector.load %arg7[%c0_20, %c0_21] : memref<8x128xf32, #tpu.memory_space<vmem>>, vector<8x128xf32>
    tpu.vector_store %arg7[%c0_20, %c0_21], %34 {strides = array<i32>} : memref<8x128xf32, #tpu.memory_space<vmem>>, vector<8x128xf32>,
    return
  }
  func.func @transform_0(%arg0: i32) -> (i32, i32) {
    %c0_i32 = arith.constant 0 : i32
    %c0_i32_0 = arith.constant 0 : i32
    %c0_i32_1 = arith.constant 0 : i32
    return %c0_i32, %c0_i32_0 : i32, i32
  }
  func.func @transform_1(%arg0: i32) -> (i32, i32) {
    %c0_i32 = arith.constant 0 : i32
    %c0_i32_0 = arith.constant 0 : i32
    return %c0_i32, %arg0 : i32, i32
  }
  func.func @transform_2(%arg0: i32) -> (i32, i32) {
    %c0_i32 = arith.constant 0 : i32
    %c0_i32_0 = arith.constant 0 : i32
    return %c0_i32, %arg0 : i32, i32
  }
  func.func @transform_3(%arg0: i32) -> (i32, i32) {
    %c0_i32 = arith.constant 0 : i32
    %c0_i32_0 = arith.constant 0 : i32
    return %c0_i32, %arg0 : i32, i32
  }
  func.func @transform_4(%arg0: i32) -> (i32, i32) {
    %c0_i32 = arith.constant 0 : i32
    %c0_i32_0 = arith.constant 0 : i32
    return %arg0, %c0_i32 : i32, i32
  }
  func.func @transform_5(%arg0: i32) -> (i32, i32) {
    %c0_i32 = arith.constant 0 : i32
    %c0_i32_0 = arith.constant 0 : i32
    %c0_i32_1 = arith.constant 0 : i32
    return %c0_i32, %c0_i32_0 : i32, i32
  }
  func.func @transform_6(%arg0: i32) -> (i32, i32) {
    %c0_i32 = arith.constant 0 : i32
    %c0_i32_0 = arith.constant 0 : i32
    %c0_i32_1 = arith.constant 0 : i32
    return %c0_i32, %c0_i32_0 : i32, i32
  }
}

module attributes {stable_mosaic.version = 11 : i64} {
  func.func @_mlp_kernel_f32out(%arg0: i32, %arg1: memref<8x128xf32, #tpu.memory_space<vmem>>, %arg2: memref<128x128xf32, #tpu.memory_space<vmem>>, %arg3: memref<1x128xf32, #tpu.memory_space<vmem>>, %arg4: memref<1x128xf32, #tpu.memory_space<vmem>>, %arg5: memref<128x128xf32, #tpu.memory_space<vmem>>, %arg6: memref<1x128xf32, #tpu.memory_space<vmem>>, %arg7: memref<8x128xf32, #tpu.memory_space<vmem>>) attributes {dimension_semantics = [#tpu.dimension_semantics<arbitrary>], iteration_bounds = array<i64: 1>, scalar_prefetch = 0 : i64, scratch_operands = 0 : i64, tpu.core_type = #tpu.core_type<tc>, window_params = [{pipeline_mode = #tpu.pipeline_mode<synchronous>, transform_indices = @transform_0, window_bounds = array<i64: 8, 128>}, {transform_indices = @transform_1, window_bounds = array<i64: 128, 128>}, {transform_indices = @transform_2, window_bounds = array<i64: 1, 128>}, {transform_indices = @transform_3, window_bounds = array<i64: 1, 128>}, {transform_indices = @transform_4, window_bounds = array<i64: 128, 128>}, {pipeline_mode = #tpu.pipeline_mode<synchronous>, transform_indices = @transform_5, window_bounds = array<i64: 1, 128>}, {pipeline_mode = #tpu.pipeline_mode<synchronous>, transform_indices = @transform_6, window_bounds = array<i64: 8, 128>}]} {
    %c0_i32 = arith.constant 0 : i32
    %0 = arith.cmpi eq, %arg0, %c0_i32 : i32
    %1 = arith.extui %0 : i1 to i32
    %c0_i32_0 = arith.constant 0 : i32
    %2 = arith.cmpi ne, %1, %c0_i32_0 : i32
    scf.if %2 {
      %c0_22 = arith.constant 0 : index
      %c0_23 = arith.constant 0 : index
      %36 = vector.load %arg6[%c0_22, %c0_23] : memref<1x128xf32, #tpu.memory_space<vmem>>, vector<1x128xf32>
      %37 = vector.shape_cast %36 : vector<1x128xf32> to vector<1x128xf32>
      %38 = vector.broadcast %37 : vector<1x128xf32> to vector<8x128xf32>
      %c0_24 = arith.constant 0 : index
      %c0_25 = arith.constant 0 : index
      %39 = vector.load %arg7[%c0_24, %c0_25] : memref<8x128xf32, #tpu.memory_space<vmem>>, vector<8x128xf32>
      tpu.vector_store %arg7[%c0_24, %c0_25], %38 {strides = array<i32>} : memref<8x128xf32, #tpu.memory_space<vmem>>, vector<8x128xf32>,
    } else {
    }
    %c0 = arith.constant 0 : index
    %c0_1 = arith.constant 0 : index
    %3 = vector.load %arg1[%c0, %c0_1] : memref<8x128xf32, #tpu.memory_space<vmem>>, vector<8x128xf32>
    %c0_2 = arith.constant 0 : index
    %c0_3 = arith.constant 0 : index
    %4 = vector.load %arg2[%c0_2, %c0_3] : memref<128x128xf32, #tpu.memory_space<vmem>>, vector<128x128xf32>
    %cst = arith.constant dense<0.000000e+00> : vector<8x128xf32>
    %5 = tpu.matmul %3, %4, %cst {dimension_numbers = #tpu.dot_dimension_numbers<[1], [0], [0], [1], [0, 0, 1, 1], [], []>} : vector<8x128xf32>, vector<128x128xf32>, vector<8x128xf32> -> vector<8x128xf32>
    %cst_4 = arith.constant dense<0.000000e+00> : vector<128xf32>
    %6 = vector.multi_reduction <add>, %5, %cst_4 [0] : vector<8x128xf32> to vector<128xf32>
    %7 = vector.shape_cast %6 : vector<128xf32> to vector<1x128xf32>
    %cst_5 = arith.constant 1.250000e-01 : f32
    %8 = vector.broadcast %cst_5 : f32 to vector<1x128xf32>
    %9 = arith.mulf %7, %8 : vector<1x128xf32>
    %10 = vector.broadcast %9 : vector<1x128xf32> to vector<8x128xf32>
    %11 = arith.subf %5, %10 : vector<8x128xf32>
    %12 = arith.mulf %11, %11 : vector<8x128xf32>
    %cst_6 = arith.constant dense<0.000000e+00> : vector<128xf32>
    %13 = vector.multi_reduction <add>, %12, %cst_6 [0] : vector<8x128xf32> to vector<128xf32>
    %14 = vector.shape_cast %13 : vector<128xf32> to vector<1x128xf32>
    %cst_7 = arith.constant 1.250000e-01 : f32
    %15 = vector.broadcast %cst_7 : f32 to vector<1x128xf32>
    %16 = arith.mulf %14, %15 : vector<1x128xf32>
    %cst_8 = arith.constant 0.000000e+00 : f32
    %17 = vector.broadcast %cst_8 : f32 to vector<1x128xf32>
    %18 = arith.maximumf %16, %17 : vector<1x128xf32>
    %cst_9 = arith.constant 1.600000e+01 : f32
    %19 = vector.broadcast %cst_9 : f32 to vector<1x128xf32>
    %20 = arith.addf %18, %19 : vector<1x128xf32>
    %21 = math.rsqrt %20 : vector<1x128xf32>
    %c0_10 = arith.constant 0 : index
    %c0_11 = arith.constant 0 : index
    %22 = vector.load %arg3[%c0_10, %c0_11] : memref<1x128xf32, #tpu.memory_space<vmem>>, vector<1x128xf32>
    %23 = arith.mulf %22, %21 : vector<1x128xf32>
    %c0_12 = arith.constant 0 : index
    %c0_13 = arith.constant 0 : index
    %24 = vector.load %arg4[%c0_12, %c0_13] : memref<1x128xf32, #tpu.memory_space<vmem>>, vector<1x128xf32>
    %25 = vector.broadcast %23 : vector<1x128xf32> to vector<8x128xf32>
    %26 = arith.mulf %11, %25 : vector<8x128xf32>
    %27 = vector.broadcast %24 : vector<1x128xf32> to vector<8x128xf32>
    %28 = arith.addf %26, %27 : vector<8x128xf32>
    %cst_14 = arith.constant 0.000000e+00 : f32
    %29 = vector.broadcast %cst_14 : f32 to vector<8x128xf32>
    %30 = arith.maximumf %28, %29 : vector<8x128xf32>
    %c0_15 = arith.constant 0 : index
    %c0_16 = arith.constant 0 : index
    %31 = vector.load %arg7[%c0_15, %c0_16] : memref<8x128xf32, #tpu.memory_space<vmem>>, vector<8x128xf32>
    %c0_17 = arith.constant 0 : index
    %c0_18 = arith.constant 0 : index
    %32 = vector.load %arg5[%c0_17, %c0_18] : memref<128x128xf32, #tpu.memory_space<vmem>>, vector<128x128xf32>
    %cst_19 = arith.constant dense<0.000000e+00> : vector<8x128xf32>
    %33 = tpu.matmul %30, %32, %cst_19 {dimension_numbers = #tpu.dot_dimension_numbers<[1], [0], [0], [1], [0, 0, 1, 1], [], []>} : vector<8x128xf32>, vector<128x128xf32>, vector<8x128xf32> -> vector<8x128xf32>
    %34 = arith.addf %31, %33 : vector<8x128xf32>
    %c0_20 = arith.constant 0 : index
    %c0_21 = arith.constant 0 : index
    %35 = vector.load %arg7[%c0_20, %c0_21] : memref<8x128xf32, #tpu.memory_space<vmem>>, vector<8x128xf32>
    tpu.vector_store %arg7[%c0_20, %c0_21], %34 {strides = array<i32>} : memref<8x128xf32, #tpu.memory_space<vmem>>, vector<8x128xf32>,
    return
  }
  func.func @transform_0(%arg0: i32) -> (i32, i32) {
    %c0_i32 = arith.constant 0 : i32
    %c0_i32_0 = arith.constant 0 : i32
    %c0_i32_1 = arith.constant 0 : i32
    return %c0_i32, %c0_i32_0 : i32, i32
  }
  func.func @transform_1(%arg0: i32) -> (i32, i32) {
    %c0_i32 = arith.constant 0 : i32
    %c0_i32_0 = arith.constant 0 : i32
    return %c0_i32, %arg0 : i32, i32
  }
  func.func @transform_2(%arg0: i32) -> (i32, i32) {
    %c0_i32 = arith.constant 0 : i32
    %c0_i32_0 = arith.constant 0 : i32
    return %c0_i32, %arg0 : i32, i32
  }
  func.func @transform_3(%arg0: i32) -> (i32, i32) {
    %c0_i32 = arith.constant 0 : i32
    %c0_i32_0 = arith.constant 0 : i32
    return %c0_i32, %arg0 : i32, i32
  }
  func.func @transform_4(%arg0: i32) -> (i32, i32) {
    %c0_i32 = arith.constant 0 : i32
    %c0_i32_0 = arith.constant 0 : i32
    return %arg0, %c0_i32 : i32, i32
  }
  func.func @transform_5(%arg0: i32) -> (i32, i32) {
    %c0_i32 = arith.constant 0 : i32
    %c0_i32_0 = arith.constant 0 : i32
    %c0_i32_1 = arith.constant 0 : i32
    return %c0_i32, %c0_i32_0 : i32, i32
  }
  func.func @transform_6(%arg0: i32) -> (i32, i32) {
    %c0_i32 = arith.constant 0 : i32
    %c0_i32_0 = arith.constant 0 : i32
    %c0_i32_1 = arith.constant 0 : i32
    return %c0_i32, %c0_i32_0 : i32, i32
  }
}

</mosaic_0001>

<llo_original>
// kernel: tpu_custom_call.1
$region0: #{tpu_custom_call.1}
  #allocation0 [shape = 'u32[]', space=smem, size = 0x4, offset = 0x4, fixed_abs, tag = 'smem constant byte address 0x4 - core index']
  #allocation1 [shape = 'u32[72,128]{1,0:T(1,128)}', space=vmem, size = 0x9000, scoped, tag = 'internal scratch']
  %s0 = inlined_call_operand.hbm [shape: f32[8,128], index: 0, kind: input, shape index: {}]
  %s1 = inlined_call_operand.hbm [shape: f32[128,128], index: 1, kind: input, shape index: {}]
  %s2 = inlined_call_operand.vmem [shape: f32[1,128], index: 2, kind: input, shape index: {}]
  %s3 = inlined_call_operand.vmem [shape: f32[1,128], index: 3, kind: input, shape index: {}]
  %s4 = inlined_call_operand.hbm [shape: f32[128,128], index: 4, kind: input, shape index: {}]
  %s5 = inlined_call_operand.vmem [shape: f32[1,128], index: 5, kind: input, shape index: {}]
  %s6 = inlined_call_operand.hbm [shape: f32[8,128], index: 6, kind: output, shape index: {}]
  %s7 = sld [smem:[#allocation0]]
  $region50: #{tpu_custom_call.1} parent=0
    _
  %s9 = ssub.s32 1, %s7
  %s10 = scalar_select 0, %s9, %s7
  $region1: #{tpu_custom_call.1} parent=0
    #allocation2 [shape = 'u8[4096]{0}', space=vmem, size = 0x1000, scoped, tag = 'input window, operand 0, single buffered']
    #allocation3 [shape = 's32[1]{0}', space=sflag, size = 0x4, scoped, tag = 'scoped memory for tpu_custom_call.1']
    #allocation4 [shape = 's32[1]{0}', space=sflag, size = 0x4, scoped, tag = 'scoped memory for tpu_custom_call.1']
    #allocation5 [shape = 'u8[65536]{0}', space=vmem, size = 0x10000, scoped, tag = 'input window, operand 1, single buffered']
    #allocation6 [shape = 's32[1]{0}', space=sflag, size = 0x4, scoped, tag = 'scoped memory for tpu_custom_call.1']
    #allocation7 [shape = 'u8[65536]{0}', space=vmem, size = 0x10000, scoped, tag = 'input window, operand 4, single buffered']
    #allocation8 [shape = 'u8[4096]{0}', space=vmem, size = 0x1000, scoped, tag = 'output window, operand 0, single buffered']
    %11 = vsyncpa [#allocation3], 0
    %12 = vsyncpa [#allocation6], 0
    %13 = vsyncpa [#allocation4], 0
    // Predicated region
    $region2: #{tpu_custom_call.1} parent=1 // pred_check
      _
    $region3: #{tpu_custom_call.1} parent=1 // pred_check_branch
      %15 = sbr.rel (0) target = $region5
    $region4: #{tpu_custom_call.1} parent=1 // pred_region
      %17 = vsyncadd [#allocation3], 0
      %s19 = sshll.u32 %s0, 4
      %s20 = int_to_ptr.hbm [resolvable:$true] %s19
      %s21 = sshll.u32 [#allocation2], 4
      %s22 = int_to_ptr.vmem [resolvable:$true] %s21
      %24 = dma.hbm_to_vmem [thread:$0]  %s20, 128, %s22, [#allocation3]
    $region5: #{tpu_custom_call.1} parent=1 // pred_fallthru
      _
    // Predicated region
    $region6: #{tpu_custom_call.1} parent=1 // pred_check
      _
    $region7: #{tpu_custom_call.1} parent=1 // pred_check_branch
      %26 = sbr.rel (0) target = $region9
    $region8: #{tpu_custom_call.1} parent=1 // pred_region
      %28 = vsyncadd [#allocation6], 0
      %s29 = sshll.u32 %s1, 4
      %s30 = int_to_ptr.hbm [resolvable:$true] %s29
      %s31 = sshll.u32 [#allocation5], 4
      %s32 = int_to_ptr.vmem [resolvable:$true] %s31
      %37 = dma.hbm_to_vmem [thread:$0]  %s30, 2048, %s32, [#allocation6], 128, 128, 8
    $region9: #{tpu_custom_call.1} parent=1 // pred_fallthru
      _
    // Predicated region
    $region10: #{tpu_custom_call.1} parent=1 // pred_check
      _
    $region11: #{tpu_custom_call.1} parent=1 // pred_check_branch
      %39 = sbr.rel (0) target = $region13
    $region12: #{tpu_custom_call.1} parent=1 // pred_region
      _
    $region13: #{tpu_custom_call.1} parent=1 // pred_fallthru
      _
    // Predicated region
    $region14: #{tpu_custom_call.1} parent=1 // pred_check
      _
    $region15: #{tpu_custom_call.1} parent=1 // pred_check_branch
      %41 = sbr.rel (0) target = $region17
    $region16: #{tpu_custom_call.1} parent=1 // pred_region
      _
    $region17: #{tpu_custom_call.1} parent=1 // pred_fallthru
      _
    // Predicated region
    $region18: #{tpu_custom_call.1} parent=1 // pred_check
      _
    $region19: #{tpu_custom_call.1} parent=1 // pred_check_branch
      %43 = sbr.rel (0) target = $region21
    $region20: #{tpu_custom_call.1} parent=1 // pred_region
      %45 = vsyncadd [#allocation6], 0
      %s46 = sshll.u32 %s4, 4
      %s47 = int_to_ptr.hbm [resolvable:$true] %s46
      %s48 = sshll.u32 [#allocation7], 4
      %s49 = int_to_ptr.vmem [resolvable:$true] %s48
      %54 = dma.hbm_to_vmem [thread:$0]  %s47, 2048, %s49, [#allocation6], 128, 128, 8
    $region21: #{tpu_custom_call.1} parent=1 // pred_fallthru
      _
    // Predicated region
    $region22: #{tpu_custom_call.1} parent=1 // pred_check
      _
    $region23: #{tpu_custom_call.1} parent=1 // pred_check_branch
      %56 = sbr.rel (0) target = $region25
    $region24: #{tpu_custom_call.1} parent=1 // pred_region
      _
    $region25: #{tpu_custom_call.1} parent=1 // pred_fallthru
      _
    // Predicated region
    $region26: #{tpu_custom_call.1} parent=1 // pred_check
      _
    $region27: #{tpu_custom_call.1} parent=1 // pred_check_branch
      %58 = sbr.rel (0) target = $region29
    $region28: #{tpu_custom_call.1} parent=1 // pred_region
      %60 = dma.done [#allocation3], 128
    $region29: #{tpu_custom_call.1} parent=1 // pred_fallthru
      _
    // Predicated region
    $region30: #{tpu_custom_call.1} parent=1 // pred_check
      _
    $region31: #{tpu_custom_call.1} parent=1 // pred_check_branch
      %62 = sbr.rel (0) target = $region33
    $region32: #{tpu_custom_call.1} parent=1 // pred_region
      %64 = dma.done [#allocation6], 2048
    $region33: #{tpu_custom_call.1} parent=1 // pred_fallthru
      _
    // Predicated region
    $region34: #{tpu_custom_call.1} parent=1 // pred_check
      _
    $region35: #{tpu_custom_call.1} parent=1 // pred_check_branch
      %66 = sbr.rel (0) target = $region37
    $region36: #{tpu_custom_call.1} parent=1 // pred_region
      %68 = dma.done [#allocation6], 2048
    $region37: #{tpu_custom_call.1} parent=1 // pred_fallthru
      _
    %p69 = scmp.eq.s32.totalorder 0, 0
    // Predicated region
    $region38: #{tpu_custom_call.1} parent=1 // pred_check
      %p70 = pneg %p69
    $region39: #{tpu_custom_call.1} parent=1 // pred_check_branch
      %72 = sbr.rel (%p70) target = $region41
    $region40: #{tpu_custom_call.1} parent=1 // pred_region
      %v73 = vld [vmem:[%s5] sm:$0x1]
      %v75 = vperm.slane %v73, 0
      %77 = vst [vmem:[#allocation8] sm:$0xff] %v75
    $region41: #{tpu_custom_call.1} parent=1 // pred_fallthru
      _
    %v78 = vld [vmem:[#allocation2] sm:$0xff]
    %v79 = vld [vmem:[#allocation5] sm:$0xff]
    %v80 = vld [vmem:[#allocation5 + $0x8] sm:$0xff]
    %v81 = vld [vmem:[#allocation5 + $0x10] sm:$0xff]
    %v82 = vld [vmem:[#allocation5 + $0x18] sm:$0xff]
    %v83 = vld [vmem:[#allocation5 + $0x20] sm:$0xff]
    %v84 = vld [vmem:[#allocation5 + $0x28] sm:$0xff]
    %v85 = vld [vmem:[#allocation5 + $0x30] sm:$0xff]
    %v86 = vld [vmem:[#allocation5 + $0x38] sm:$0xff]
    %v87 = vld [vmem:[#allocation5 + $0x40] sm:$0xff]
    %v88 = vld [vmem:[#allocation5 + $0x48] sm:$0xff]
    %v89 = vld [vmem:[#allocation5 + $0x50] sm:$0xff]
    %v90 = vld [vmem:[#allocation5 + $0x58] sm:$0xff]
    %v91 = vld [vmem:[#allocation5 + $0x60] sm:$0xff]
    %v92 = vld [vmem:[#allocation5 + $0x68] sm:$0xff]
    %v93 = vld [vmem:[#allocation5 + $0x70] sm:$0xff]
    %v94 = vld [vmem:[#allocation5 + $0x78] sm:$0xff]
    %95 = vmatpush.msra.mxu0 %v94
    %96 = vmatpush.msra.mxu0 %v93
    %97 = vmatpush.msra.mxu0 %v92
    %98 = vmatpush.msra.mxu0 %v91
    %99 = vmatpush.msra.mxu0 %v90
    %100 = vmatpush.msra.mxu0 %v89
    %101 = vmatpush.msra.mxu0 %v88
    %102 = vmatpush.msra.mxu0 %v87
    %103 = vmatpush.msra.mxu0 %v86
    %104 = vmatpush.msra.mxu0 %v85
    %105 = vmatpush.msra.mxu0 %v84
    %106 = vmatpush.msra.mxu0 %v83
    %107 = vmatpush.msra.mxu0 %v82
    %108 = vmatpush.msra.mxu0 %v81
    %109 = vmatpush.msra.mxu0 %v80
    %110 = vmatpush.msra.mxu0 %v79
    %111 = vmatmul.f32.gmra.mxu0 %v78
    %v112 = vpop.f32.mrf.mxu0
    %v113 = vadd.f32 0.0, %v112
    %114 = vdwg.mxu0
    %v115 = vrot.slane %v113, 4
    %v116 = vadd.f32 %v113, %v115
    %v117 = vrot.slane %v116, 2
    %v118 = vadd.f32 %v116, %v117
    %v119 = vrot.slane %v118, 1
    %v120 = vadd.f32 %v118, %v119
    %v121 = vmul.f32 %v120, 0.125
    %v122 = vsub.f32 %v113, %v121
    %v123 = vmul.f32 %v122, %v122
    %v124 = vrot.slane %v123, 4
    %v125 = vadd.f32 %v123, %v124
    %v126 = vrot.slane %v125, 2
    %v127 = vadd.f32 %v125, %v126
    %v128 = vrot.slane %v127, 1
    %v129 = vadd.f32 %v127, %v128
    %v130 = vmul.f32 %v129, 0.125
    %v131 = vmax.f32 %v130, 0.0
    %v132 = vadd.f32 %v131, 16.0
    %v133 = vrsqrt.pop %v132
    %v134 = vmul.f32 %v133, %v132
    %v135 = vmul.f32 %v134, %v133
    %v136 = vmul.f32 0.5, %v135
    %v137 = vsub.f32 1.5, %v136
    %v138 = vmul.f32 %v133, %v137
    %vm139 = vweird.f32 %v132
    %vm140 = vweird.f32 %v133
    %vm141 = vmor %vm139, %vm140
    %v142 = vsel %vm141, %v133, %v138
    %v143 = vld [vmem:[%s2] sm:$0x1]
    %v144 = vmul.f32 %v143, %v142
    %v145 = vld [vmem:[%s3] sm:$0x1]
    %v147 = vperm.slane %v144, 0
    %v149 = vmul.f32 %v122, %v147
    %v151 = vperm.slane %v145, 0
    %v153 = vadd.f32 %v149, %v151
    %v154 = vmax.f32 %v153, 0.0
    %v155 = vld [vmem:[#allocation8] sm:$0xff]
    %v156 = vld [vmem:[#allocation7] sm:$0xff]
    %v157 = vld [vmem:[#allocation7 + $0x8] sm:$0xff]
    %v158 = vld [vmem:[#allocation7 + $0x10] sm:$0xff]
    %v159 = vld [vmem:[#allocation7 + $0x18] sm:$0xff]
    %v160 = vld [vmem:[#allocation7 + $0x20] sm:$0xff]
    %v161 = vld [vmem:[#allocation7 + $0x28] sm:$0xff]
    %v162 = vld [vmem:[#allocation7 + $0x30] sm:$0xff]
    %v163 = vld [vmem:[#allocation7 + $0x38] sm:$0xff]
    %v164 = vld [vmem:[#allocation7 + $0x40] sm:$0xff]
    %v165 = vld [vmem:[#allocation7 + $0x48] sm:$0xff]
    %v166 = vld [vmem:[#allocation7 + $0x50] sm:$0xff]
    %v167 = vld [vmem:[#allocation7 + $0x58] sm:$0xff]
    %v168 = vld [vmem:[#allocation7 + $0x60] sm:$0xff]
    %v169 = vld [vmem:[#allocation7 + $0x68] sm:$0xff]
    %v170 = vld [vmem:[#allocation7 + $0x70] sm:$0xff]
    %v171 = vld [vmem:[#allocation7 + $0x78] sm:$0xff]
    %172 = vmatpush.msra.mxu0 %v171
    %173 = vmatpush.msra.mxu0 %v170
    %174 = vmatpush.msra.mxu0 %v169
    %175 = vmatpush.msra.mxu0 %v168
    %176 = vmatpush.msra.mxu0 %v167
    %177 = vmatpush.msra.mxu0 %v166
    %178 = vmatpush.msra.mxu0 %v165
    %179 = vmatpush.msra.mxu0 %v164
    %180 = vmatpush.msra.mxu0 %v163
    %181 = vmatpush.msra.mxu0 %v162
    %182 = vmatpush.msra.mxu0 %v161
    %183 = vmatpush.msra.mxu0 %v160
    %184 = vmatpush.msra.mxu0 %v159
    %185 = vmatpush.msra.mxu0 %v158
    %186 = vmatpush.msra.mxu0 %v157
    %187 = vmatpush.msra.mxu0 %v156
    %188 = vmatmul.f32.gmra.mxu0 %v154
    %v189 = vpop.f32.mrf.mxu0
    %v190 = vadd.f32 0.0, %v189
    %191 = vdwg.mxu0
    %v192 = vadd.f32 %v155, %v190
    %193 = vst [vmem:[#allocation8] sm:$0xff] %v192
    // Predicated region
    $region42: #{tpu_custom_call.1} parent=1 // pred_check
      _
    $region43: #{tpu_custom_call.1} parent=1 // pred_check_branch
      %195 = sbr.rel (0) target = $region45
    $region44: #{tpu_custom_call.1} parent=1 // pred_region
      %197 = vsyncadd [#allocation4], 0
      %s199 = sshll.u32 [#allocation8], 4
      %s200 = int_to_ptr.vmem [resolvable:$true] %s199
      %s201 = sshll.u32 %s6, 4
      %s202 = int_to_ptr.hbm [resolvable:$true] %s201
      %204 = dma.vmem_to_hbm [thread:$0]  %s200, 128, %s202, [#allocation4]
    $region45: #{tpu_custom_call.1} parent=1 // pred_fallthru
      _
    // Predicated region
    $region46: #{tpu_custom_call.1} parent=1 // pred_check
      _
    $region47: #{tpu_custom_call.1} parent=1 // pred_check_branch
      %206 = sbr.rel (0) target = $region49
    $region48: #{tpu_custom_call.1} parent=1 // pred_region
      %208 = dma.done [#allocation4], 128
    $region49: #{tpu_custom_call.1} parent=1 // pred_fallthru
      _
    %209 = vsyncpa [#allocation3], 1
    %210 = vsyncpa [#allocation6], 1
    %211 = vsyncpa [#allocation4], 1

// kernel: tpu_custom_call.1
$region0: #{tpu_custom_call.1}
  #allocation0 [shape = 'u32[]', space=smem, size = 0x4, offset = 0x4, fixed_abs, tag = 'smem constant byte address 0x4 - core index']
  #allocation1 [shape = 'u32[72,128]{1,0:T(1,128)}', space=vmem, size = 0x9000, scoped, tag = 'internal scratch']
  %s0 = inlined_call_operand.hbm [shape: f32[8,128], index: 0, kind: input, shape index: {}]
  %s1 = inlined_call_operand.hbm [shape: f32[128,128], index: 1, kind: input, shape index: {}]
  %s2 = inlined_call_operand.vmem [shape: f32[1,128], index: 2, kind: input, shape index: {}]
  %s3 = inlined_call_operand.vmem [shape: f32[1,128], index: 3, kind: input, shape index: {}]
  %s4 = inlined_call_operand.hbm [shape: f32[128,128], index: 4, kind: input, shape index: {}]
  %s5 = inlined_call_operand.vmem [shape: f32[1,128], index: 5, kind: input, shape index: {}]
  %s6 = inlined_call_operand.hbm [shape: f32[8,128], index: 6, kind: output, shape index: {}]
  %s7 = sld [smem:[#allocation0]]
  $region50: #{tpu_custom_call.1} parent=0
    _
  %s9 = ssub.s32 1, %s7
  %s10 = scalar_select 0, %s9, %s7
  $region1: #{tpu_custom_call.1} parent=0
    #allocation2 [shape = 'u8[4096]{0}', space=vmem, size = 0x1000, scoped, tag = 'input window, operand 0, single buffered']
    #allocation3 [shape = 's32[1]{0}', space=sflag, size = 0x4, scoped, tag = 'scoped memory for tpu_custom_call.1']
    #allocation4 [shape = 's32[1]{0}', space=sflag, size = 0x4, scoped, tag = 'scoped memory for tpu_custom_call.1']
    #allocation5 [shape = 'u8[65536]{0}', space=vmem, size = 0x10000, scoped, tag = 'input window, operand 1, single buffered']
    #allocation6 [shape = 's32[1]{0}', space=sflag, size = 0x4, scoped, tag = 'scoped memory for tpu_custom_call.1']
    #allocation7 [shape = 'u8[65536]{0}', space=vmem, size = 0x10000, scoped, tag = 'input window, operand 4, single buffered']
    #allocation8 [shape = 'u8[4096]{0}', space=vmem, size = 0x1000, scoped, tag = 'output window, operand 0, single buffered']
    %11 = vsyncpa [#allocation3], 0
    %12 = vsyncpa [#allocation6], 0
    %13 = vsyncpa [#allocation4], 0
    // Predicated region
    $region2: #{tpu_custom_call.1} parent=1 // pred_check
      _
    $region3: #{tpu_custom_call.1} parent=1 // pred_check_branch
      %15 = sbr.rel (0) target = $region5
    $region4: #{tpu_custom_call.1} parent=1 // pred_region
      %17 = vsyncadd [#allocation3], 0
      %s19 = sshll.u32 %s0, 4
      %s20 = int_to_ptr.hbm [resolvable:$true] %s19
      %s21 = sshll.u32 [#allocation2], 4
      %s22 = int_to_ptr.vmem [resolvable:$true] %s21
      %24 = dma.hbm_to_vmem [thread:$0]  %s20, 128, %s22, [#allocation3]
    $region5: #{tpu_custom_call.1} parent=1 // pred_fallthru
      _
    // Predicated region
    $region6: #{tpu_custom_call.1} parent=1 // pred_check
      _
    $region7: #{tpu_custom_call.1} parent=1 // pred_check_branch
      %26 = sbr.rel (0) target = $region9
    $region8: #{tpu_custom_call.1} parent=1 // pred_region
      %28 = vsyncadd [#allocation6], 0
      %s29 = sshll.u32 %s1, 4
      %s30 = int_to_ptr.hbm [resolvable:$true] %s29
      %s31 = sshll.u32 [#allocation5], 4
      %s32 = int_to_ptr.vmem [resolvable:$true] %s31
      %37 = dma.hbm_to_vmem [thread:$0]  %s30, 2048, %s32, [#allocation6], 128, 128, 8
    $region9: #{tpu_custom_call.1} parent=1 // pred_fallthru
      _
    // Predicated region
    $region10: #{tpu_custom_call.1} parent=1 // pred_check
      _
    $region11: #{tpu_custom_call.1} parent=1 // pred_check_branch
      %39 = sbr.rel (0) target = $region13
    $region12: #{tpu_custom_call.1} parent=1 // pred_region
      _
    $region13: #{tpu_custom_call.1} parent=1 // pred_fallthru
      _
    // Predicated region
    $region14: #{tpu_custom_call.1} parent=1 // pred_check
      _
    $region15: #{tpu_custom_call.1} parent=1 // pred_check_branch
      %41 = sbr.rel (0) target = $region17
    $region16: #{tpu_custom_call.1} parent=1 // pred_region
      _
    $region17: #{tpu_custom_call.1} parent=1 // pred_fallthru
      _
    // Predicated region
    $region18: #{tpu_custom_call.1} parent=1 // pred_check
      _
    $region19: #{tpu_custom_call.1} parent=1 // pred_check_branch
      %43 = sbr.rel (0) target = $region21
    $region20: #{tpu_custom_call.1} parent=1 // pred_region
      %45 = vsyncadd [#allocation6], 0
      %s46 = sshll.u32 %s4, 4
      %s47 = int_to_ptr.hbm [resolvable:$true] %s46
      %s48 = sshll.u32 [#allocation7], 4
      %s49 = int_to_ptr.vmem [resolvable:$true] %s48
      %54 = dma.hbm_to_vmem [thread:$0]  %s47, 2048, %s49, [#allocation6], 128, 128, 8
    $region21: #{tpu_custom_call.1} parent=1 // pred_fallthru
      _
    // Predicated region
    $region22: #{tpu_custom_call.1} parent=1 // pred_check
      _
    $region23: #{tpu_custom_call.1} parent=1 // pred_check_branch
      %56 = sbr.rel (0) target = $region25
    $region24: #{tpu_custom_call.1} parent=1 // pred_region
      _
    $region25: #{tpu_custom_call.1} parent=1 // pred_fallthru
      _
    // Predicated region
    $region26: #{tpu_custom_call.1} parent=1 // pred_check
      _
    $region27: #{tpu_custom_call.1} parent=1 // pred_check_branch
      %58 = sbr.rel (0) target = $region29
    $region28: #{tpu_custom_call.1} parent=1 // pred_region
      %60 = dma.done [#allocation3], 128
    $region29: #{tpu_custom_call.1} parent=1 // pred_fallthru
      _
    // Predicated region
    $region30: #{tpu_custom_call.1} parent=1 // pred_check
      _
    $region31: #{tpu_custom_call.1} parent=1 // pred_check_branch
      %62 = sbr.rel (0) target = $region33
    $region32: #{tpu_custom_call.1} parent=1 // pred_region
      %64 = dma.done [#allocation6], 2048
    $region33: #{tpu_custom_call.1} parent=1 // pred_fallthru
      _
    // Predicated region
    $region34: #{tpu_custom_call.1} parent=1 // pred_check
      _
    $region35: #{tpu_custom_call.1} parent=1 // pred_check_branch
      %66 = sbr.rel (0) target = $region37
    $region36: #{tpu_custom_call.1} parent=1 // pred_region
      %68 = dma.done [#allocation6], 2048
    $region37: #{tpu_custom_call.1} parent=1 // pred_fallthru
      _
    %p69 = scmp.eq.s32.totalorder 0, 0
    // Predicated region
    $region38: #{tpu_custom_call.1} parent=1 // pred_check
      %p70 = pneg %p69
    $region39: #{tpu_custom_call.1} parent=1 // pred_check_branch
      %72 = sbr.rel (%p70) target = $region41
    $region40: #{tpu_custom_call.1} parent=1 // pred_region
      %v73 = vld [vmem:[%s5] sm:$0x1]
      %v75 = vperm.slane %v73, 0
      %77 = vst [vmem:[#allocation8] sm:$0xff] %v75
    $region41: #{tpu_custom_call.1} parent=1 // pred_fallthru
      _
    %v78 = vld [vmem:[#allocation2] sm:$0xff]
    %v79 = vld [vmem:[#allocation5] sm:$0xff]
    %v80 = vld [vmem:[#allocation5 + $0x8] sm:$0xff]
    %v81 = vld [vmem:[#allocation5 + $0x10] sm:$0xff]
    %v82 = vld [vmem:[#allocation5 + $0x18] sm:$0xff]
    %v83 = vld [vmem:[#allocation5 + $0x20] sm:$0xff]
    %v84 = vld [vmem:[#allocation5 + $0x28] sm:$0xff]
    %v85 = vld [vmem:[#allocation5 + $0x30] sm:$0xff]
    %v86 = vld [vmem:[#allocation5 + $0x38] sm:$0xff]
    %v87 = vld [vmem:[#allocation5 + $0x40] sm:$0xff]
    %v88 = vld [vmem:[#allocation5 + $0x48] sm:$0xff]
    %v89 = vld [vmem:[#allocation5 + $0x50] sm:$0xff]
    %v90 = vld [vmem:[#allocation5 + $0x58] sm:$0xff]
    %v91 = vld [vmem:[#allocation5 + $0x60] sm:$0xff]
    %v92 = vld [vmem:[#allocation5 + $0x68] sm:$0xff]
    %v93 = vld [vmem:[#allocation5 + $0x70] sm:$0xff]
    %v94 = vld [vmem:[#allocation5 + $0x78] sm:$0xff]
    %95 = vmatpush.msra.mxu0 %v94
    %96 = vmatpush.msra.mxu0 %v93
    %97 = vmatpush.msra.mxu0 %v92
    %98 = vmatpush.msra.mxu0 %v91
    %99 = vmatpush.msra.mxu0 %v90
    %100 = vmatpush.msra.mxu0 %v89
    %101 = vmatpush.msra.mxu0 %v88
    %102 = vmatpush.msra.mxu0 %v87
    %103 = vmatpush.msra.mxu0 %v86
    %104 = vmatpush.msra.mxu0 %v85
    %105 = vmatpush.msra.mxu0 %v84
    %106 = vmatpush.msra.mxu0 %v83
    %107 = vmatpush.msra.mxu0 %v82
    %108 = vmatpush.msra.mxu0 %v81
    %109 = vmatpush.msra.mxu0 %v80
    %110 = vmatpush.msra.mxu0 %v79
    %111 = vmatmul.f32.gmra.mxu0 %v78
    %v112 = vpop.f32.mrf.mxu0
    %v113 = vadd.f32 0.0, %v112
    %114 = vdwg.mxu0
    %v115 = vrot.slane %v113, 4
    %v116 = vadd.f32 %v113, %v115
    %v117 = vrot.slane %v116, 2
    %v118 = vadd.f32 %v116, %v117
    %v119 = vrot.slane %v118, 1
    %v120 = vadd.f32 %v118, %v119
    %v121 = vmul.f32 %v120, 0.125
    %v122 = vsub.f32 %v113, %v121
    %v123 = vmul.f32 %v122, %v122
    %v124 = vrot.slane %v123, 4
    %v125 = vadd.f32 %v123, %v124
    %v126 = vrot.slane %v125, 2
    %v127 = vadd.f32 %v125, %v126
    %v128 = vrot.slane %v127, 1
    %v129 = vadd.f32 %v127, %v128
    %v130 = vmul.f32 %v129, 0.125
    %v131 = vmax.f32 %v130, 0.0
    %v132 = vadd.f32 %v131, 16.0
    %v133 = vrsqrt.pop %v132
    %v134 = vmul.f32 %v133, %v132
    %v135 = vmul.f32 %v134, %v133
    %v136 = vmul.f32 0.5, %v135
    %v137 = vsub.f32 1.5, %v136
    %v138 = vmul.f32 %v133, %v137
    %vm139 = vweird.f32 %v132
    %vm140 = vweird.f32 %v133
    %vm141 = vmor %vm139, %vm140
    %v142 = vsel %vm141, %v133, %v138
    %v143 = vld [vmem:[%s2] sm:$0x1]
    %v144 = vmul.f32 %v143, %v142
    %v145 = vld [vmem:[%s3] sm:$0x1]
    %v147 = vperm.slane %v144, 0
    %v149 = vmul.f32 %v122, %v147
    %v151 = vperm.slane %v145, 0
    %v153 = vadd.f32 %v149, %v151
    %v154 = vmax.f32 %v153, 0.0
    %v155 = vld [vmem:[#allocation8] sm:$0xff]
    %v156 = vld [vmem:[#allocation7] sm:$0xff]
    %v157 = vld [vmem:[#allocation7 + $0x8] sm:$0xff]
    %v158 = vld [vmem:[#allocation7 + $0x10] sm:$0xff]
    %v159 = vld [vmem:[#allocation7 + $0x18] sm:$0xff]
    %v160 = vld [vmem:[#allocation7 + $0x20] sm:$0xff]
    %v161 = vld [vmem:[#allocation7 + $0x28] sm:$0xff]
    %v162 = vld [vmem:[#allocation7 + $0x30] sm:$0xff]
    %v163 = vld [vmem:[#allocation7 + $0x38] sm:$0xff]
    %v164 = vld [vmem:[#allocation7 + $0x40] sm:$0xff]
    %v165 = vld [vmem:[#allocation7 + $0x48] sm:$0xff]
    %v166 = vld [vmem:[#allocation7 + $0x50] sm:$0xff]
    %v167 = vld [vmem:[#allocation7 + $0x58] sm:$0xff]
    %v168 = vld [vmem:[#allocation7 + $0x60] sm:$0xff]
    %v169 = vld [vmem:[#allocation7 + $0x68] sm:$0xff]
    %v170 = vld [vmem:[#allocation7 + $0x70] sm:$0xff]
    %v171 = vld [vmem:[#allocation7 + $0x78] sm:$0xff]
    %172 = vmatpush.msra.mxu0 %v171
    %173 = vmatpush.msra.mxu0 %v170
    %174 = vmatpush.msra.mxu0 %v169
    %175 = vmatpush.msra.mxu0 %v168
    %176 = vmatpush.msra.mxu0 %v167
    %177 = vmatpush.msra.mxu0 %v166
    %178 = vmatpush.msra.mxu0 %v165
    %179 = vmatpush.msra.mxu0 %v164
    %180 = vmatpush.msra.mxu0 %v163
    %181 = vmatpush.msra.mxu0 %v162
    %182 = vmatpush.msra.mxu0 %v161
    %183 = vmatpush.msra.mxu0 %v160
    %184 = vmatpush.msra.mxu0 %v159
    %185 = vmatpush.msra.mxu0 %v158
    %186 = vmatpush.msra.mxu0 %v157
    %187 = vmatpush.msra.mxu0 %v156
    %188 = vmatmul.f32.gmra.mxu0 %v154
    %v189 = vpop.f32.mrf.mxu0
    %v190 = vadd.f32 0.0, %v189
    %191 = vdwg.mxu0
    %v192 = vadd.f32 %v155, %v190
    %193 = vst [vmem:[#allocation8] sm:$0xff] %v192
    // Predicated region
    $region42: #{tpu_custom_call.1} parent=1 // pred_check
      _
    $region43: #{tpu_custom_call.1} parent=1 // pred_check_branch
      %195 = sbr.rel (0) target = $region45
    $region44: #{tpu_custom_call.1} parent=1 // pred_region
      %197 = vsyncadd [#allocation4], 0
      %s199 = sshll.u32 [#allocation8], 4
      %s200 = int_to_ptr.vmem [resolvable:$true] %s199
      %s201 = sshll.u32 %s6, 4
      %s202 = int_to_ptr.hbm [resolvable:$true] %s201
      %204 = dma.vmem_to_hbm [thread:$0]  %s200, 128, %s202, [#allocation4]
    $region45: #{tpu_custom_call.1} parent=1 // pred_fallthru
      _
    // Predicated region
    $region46: #{tpu_custom_call.1} parent=1 // pred_check
      _
    $region47: #{tpu_custom_call.1} parent=1 // pred_check_branch
      %206 = sbr.rel (0) target = $region49
    $region48: #{tpu_custom_call.1} parent=1 // pred_region
      %208 = dma.done [#allocation4], 128
    $region49: #{tpu_custom_call.1} parent=1 // pred_fallthru
      _
    %209 = vsyncpa [#allocation3], 1
    %210 = vsyncpa [#allocation6], 1
    %211 = vsyncpa [#allocation4], 1

</llo_original>
